<compile_context>
chip_gen: v7x
topology: tpu7x:2x2x1
jax: 0.10.0
libtpu: 0.0.40
codegen_flags: <defaults>
</compile_context>

<pallas_src>
import jax
import jax.numpy as jnp
from jax import lax
from jax.experimental import pallas as pl
from jax.experimental.pallas import tpu as pltpu

_SUB = 512        # lanes per inner sub-tile (one fori_loop step)
_MAX_ROWS = 8     # sub-tiles per grid step for large batches (8 * 512 = 4096 events)


def _hawkes_kernel(evt_ref, obs_ref, beta_ref, out_ref):
    """evt_ref : [4, rows, SUB] int32  (rows: tp / sp / s / bitcast(t))
       obs_ref : [n_space, n_time] f32 == obs^T * diag(alpha)   (grid-invariant)
       beta_ref: [1] f32 in SMEM
       out_ref : [rows, SUB] f32
    """
    n_space, n_time = obs_ref.shape
    n_sub = evt_ref.shape[1]          # static sub-tile count per grid step
    sub = evt_ref.shape[2]

    beta = beta_ref[0]
    neg_beta = -beta

    # Hoisted out of the sub-tile loop (JAX does not CSE broadcast_in_dim).
    obs_s = obs_ref[...]
    time_iota = lax.broadcasted_iota(jnp.int32, (n_time, sub), 0)
    space_iota = lax.broadcasted_iota(jnp.int32, (n_space, sub), 0)

    def body(j, carry):
        tp_i = evt_ref[0, pl.ds(j, 1), :]                       # [1, sub] int32
        sp_i = evt_ref[1, pl.ds(j, 1), :]
        s_i = evt_ref[2, pl.ds(j, 1), :]
        t_f = pltpu.bitcast(evt_ref[3, pl.ds(j, 1), :], jnp.float32)

        # obs[tp, :] gather as one small one-hot MXU matmul (batch stays on lanes).
        onehot_tp = (time_iota == tp_i).astype(jnp.float32)     # [n_time, sub]
        rows = jnp.dot(obs_s, onehot_tp,
                       preferred_element_type=jnp.float32)      # [n_space, sub]

        # (sp == s) folded into the space selector: one masked sublane reduce
        # yields (sp==s) * alpha[sp,sp] * obs[tp,sp].
        sel = (space_iota == sp_i) & (space_iota == s_i)
        core = jnp.sum(jnp.where(sel, rows, 0.0),
                       axis=0, keepdims=True)                   # [1, sub]

        decay = jnp.exp(neg_beta * jnp.abs(t_f - tp_i.astype(jnp.float32)))  # EUP
        out_ref[pl.ds(j, 1), :] = core * (beta * decay)
        return carry

    lax.fori_loop(0, n_sub, body, 0, unroll=True)


def discrete_exponential_kernel(tp, sp, t, s, obs, alpha, beta):
    """Args match the PyTorch forward: tp, sp, t, s are [B]; returns [B] f32."""
    B = tp.shape[0]
    n_time, n_space = obs.shape

    # Blocking: rows of 512 lanes; up to 8 rows (4096 events) per grid step.
    R = pl.cdiv(B, _SUB)
    if R <= _MAX_ROWS:
        rows_per_block = R            # single grid step for small/medium B
    else:
        rows_per_block = _MAX_ROWS    # >= 2 grid steps -> both v7x TensorCores
    R_pad = pl.cdiv(R, rows_per_block) * rows_per_block
    B_pad = R_pad * _SUB

    # Pack the four per-event streams into ONE int32 slab, pad once, reshape to
    # [4, R_pad, SUB]. (t is bit-cast to int32 and restored in-kernel.)
    t_bits = lax.bitcast_convert_type(t.astype(jnp.float32), jnp.int32)
    packed = jnp.stack([tp.astype(jnp.int32), sp.astype(jnp.int32),
                        s.astype(jnp.int32), t_bits], axis=0)            # [4, B]
    packed = jnp.pad(packed, ((0, 0), (0, B_pad - B))).reshape(4, R_pad, _SUB)

    # Grid-invariant layout plumbing: obs transposed (so the one-hot gather
    # matmul keeps batch on lanes) and pre-scaled by diag(alpha).
    obs_scaled = (obs.astype(jnp.float32).T
                  * jnp.diagonal(alpha).astype(jnp.float32)[:, None])    # [n_space, n_time]
    beta_f = beta.astype(jnp.float32).reshape(1)

    grid = (R_pad // rows_per_block,)
    out = pl.pallas_call(
        _hawkes_kernel,
        out_shape=jax.ShapeDtypeStruct((R_pad, _SUB), jnp.float32),
        grid_spec=pltpu.PrefetchScalarGridSpec(
            num_scalar_prefetch=0,
            grid=grid,
            in_specs=[
                pl.BlockSpec((4, rows_per_block, _SUB), lambda i: (0, i, 0)),  # packed events
                pl.BlockSpec((n_space, n_time), lambda i: (0, 0)),             # obs^T*diag(alpha)
                pl.BlockSpec(memory_space=pltpu.MemorySpace.SMEM),             # beta
            ],
            out_specs=pl.BlockSpec((rows_per_block, _SUB), lambda i: (i, 0)),
        ),
        compiler_params=pltpu.CompilerParams(
            dimension_semantics=("parallel",)),
    )(packed, obs_scaled, beta_f)

    return out.reshape(B_pad)[:B]


def _reference(tp, sp, t, s, obs, alpha, beta):
    obs_ = obs[tp, sp].astype(jnp.float32)
    temp = jnp.eye(obs.shape[1], dtype=jnp.float32) * alpha
    alpha_ = temp[sp, s]
    b = beta[0]
    return alpha_ * obs_ * b * jnp.exp(-b * jnp.abs(
        t.astype(jnp.float32) - tp.astype(jnp.float32)))


if __name__ == "__main__":
    key = jax.random.PRNGKey(0)
    n_time, n_space, batch = 16, 8, 8

    k1, k2, k3, k4, k5 = jax.random.split(key, 5)
    obs = jax.random.randint(k1, (n_time, n_space), 0, 6, dtype=jnp.int32)
    tp = jax.random.randint(k2, (batch,), 0, n_time, dtype=jnp.int32)
    sp = jax.random.randint(k3, (batch,), 0, n_space, dtype=jnp.int32)
    s = jax.random.randint(k4, (batch,), 0, n_space, dtype=jnp.int32)
    # force a few diagonal hits so alpha_ is not identically zero
    s = s.at[:4].set(sp[:4])
    t = jax.random.uniform(k5, (batch,), jnp.float32, 0.0, float(n_time))

    # deterministic parameter init (shapes per __init__: alpha [n_space, n_space], beta [1])
    alpha = (jnp.eye(n_space, dtype=jnp.float32) * 0.5
             + 0.01 * jnp.arange(n_space * n_space,
                                 dtype=jnp.float32).reshape(n_space, n_space))
    beta = jnp.array([0.7], dtype=jnp.float32)

    val = discrete_exponential_kernel(tp, sp, t, s, obs, alpha, beta)
    jax.block_until_ready(val)

    ref = _reference(tp, sp, t, s, obs, alpha, beta)
    assert val.shape == (batch,)
    assert jnp.allclose(val, ref, atol=1e-5, rtol=1e-5)
    print("KERNEL_OK")
</pallas_src>

<mosaic_0001>
module attributes {stable_mosaic.version = 11 : i64} {
  func.func @_hawkes_kernel(%arg0: i32, %arg1: memref<4x1x512xi32, #tpu.memory_space<vmem>>, %arg2: memref<8x16xf32, #tpu.memory_space<vmem>>, %arg3: memref<1xf32, #tpu.memory_space<smem>>, %arg4: memref<1x512xf32, #tpu.memory_space<vmem>>) attributes {dimension_semantics = [#tpu.dimension_semantics<parallel>], iteration_bounds = array<i64: 1>, scalar_prefetch = 0 : i64, scratch_operands = 0 : i64, tpu.core_type = #tpu.core_type<tc>, window_params = [{transform_indices = @transform_0, window_bounds = array<i64: 4, 1, 512>}, {pipeline_mode = #tpu.pipeline_mode<synchronous>, transform_indices = @transform_1, window_bounds = array<i64: 8, 16>}, {transform_indices = @transform_2, window_bounds = array<i64: 1>}, {transform_indices = @transform_3, window_bounds = array<i64: 1, 512>}]} {
    %c0 = arith.constant 0 : index
    %0 = memref.load %arg3[%c0] : memref<1xf32, #tpu.memory_space<smem>>
    %cst = arith.constant 0.000000e+00 : f32
    %1 = arith.subf %cst, %0 : f32
    %c0_0 = arith.constant 0 : index
    %c0_1 = arith.constant 0 : index
    %2 = vector.load %arg2[%c0_0, %c0_1] : memref<8x16xf32, #tpu.memory_space<vmem>>, vector<8x16xf32>
    %3 = tpu.iota {dimensions = array<i32: 0>} : vector<16x512xi32>
    %4 = tpu.iota {dimensions = array<i32: 0>} : vector<8x512xi32>
    %c0_i32 = arith.constant 0 : i32
    %c0_2 = arith.constant 0 : index
    %5 = arith.index_cast %c0_i32 : i32 to index
    %c0_3 = arith.constant 0 : index
    %6 = vector.load %arg1[%c0_2, %5, %c0_3] : memref<4x1x512xi32, #tpu.memory_space<vmem>>, vector<1x1x512xi32>
    %7 = vector.shape_cast %6 : vector<1x1x512xi32> to vector<1x512xi32>
    %c1 = arith.constant 1 : index
    %8 = arith.index_cast %c0_i32 : i32 to index
    %c0_4 = arith.constant 0 : index
    %9 = vector.load %arg1[%c1, %8, %c0_4] : memref<4x1x512xi32, #tpu.memory_space<vmem>>, vector<1x1x512xi32>
    %10 = vector.shape_cast %9 : vector<1x1x512xi32> to vector<1x512xi32>
    %c2 = arith.constant 2 : index
    %11 = arith.index_cast %c0_i32 : i32 to index
    %c0_5 = arith.constant 0 : index
    %12 = vector.load %arg1[%c2, %11, %c0_5] : memref<4x1x512xi32, #tpu.memory_space<vmem>>, vector<1x1x512xi32>
    %13 = vector.shape_cast %12 : vector<1x1x512xi32> to vector<1x512xi32>
    %c3 = arith.constant 3 : index
    %14 = arith.index_cast %c0_i32 : i32 to index
    %c0_6 = arith.constant 0 : index
    %15 = vector.load %arg1[%c3, %14, %c0_6] : memref<4x1x512xi32, #tpu.memory_space<vmem>>, vector<1x1x512xi32>
    %16 = vector.shape_cast %15 : vector<1x1x512xi32> to vector<1x512xi32>
    %17 = tpu.bitcast %16 : vector<1x512xi32> -> vector<1x512xf32>
    %18 = vector.broadcast %7 : vector<1x512xi32> to vector<16x512xi32>
    %19 = arith.cmpi eq, %3, %18 : vector<16x512xi32>
    %20 = arith.extui %19 : vector<16x512xi1> to vector<16x512xi32>
    %21 = arith.sitofp %20 : vector<16x512xi32> to vector<16x512xf32>
    %cst_7 = arith.constant dense<0.000000e+00> : vector<8x512xf32>
    %22 = tpu.matmul %2, %21, %cst_7 {dimension_numbers = #tpu.dot_dimension_numbers<[1], [0], [0], [1], [0, 0, 1, 1], [], []>} : vector<8x16xf32>, vector<16x512xf32>, vector<8x512xf32> -> vector<8x512xf32>
    %23 = vector.broadcast %10 : vector<1x512xi32> to vector<8x512xi32>
    %24 = arith.cmpi eq, %4, %23 : vector<8x512xi32>
    %25 = vector.broadcast %13 : vector<1x512xi32> to vector<8x512xi32>
    %26 = arith.cmpi eq, %4, %25 : vector<8x512xi32>
    %27 = arith.andi %24, %26 : vector<8x512xi1>
    %cst_8 = arith.constant 0.000000e+00 : f32
    %28 = vector.broadcast %cst_8 : f32 to vector<8x512xf32>
    %29 = arith.select %27, %22, %28 : vector<8x512xi1>, vector<8x512xf32>
    %cst_9 = arith.constant dense<0.000000e+00> : vector<512xf32>
    %30 = vector.multi_reduction <add>, %29, %cst_9 [0] : vector<8x512xf32> to vector<512xf32>
    %31 = vector.shape_cast %30 : vector<512xf32> to vector<1x512xf32>
    %32 = arith.sitofp %7 : vector<1x512xi32> to vector<1x512xf32>
    %33 = arith.subf %17, %32 : vector<1x512xf32>
    %34 = math.absf %33 : vector<1x512xf32>
    %35 = vector.broadcast %1 : f32 to vector<1x512xf32>
    %36 = arith.mulf %35, %34 : vector<1x512xf32>
    %37 = math.exp %36 : vector<1x512xf32>
    %38 = vector.broadcast %0 : f32 to vector<1x512xf32>
    %39 = arith.mulf %38, %37 : vector<1x512xf32>
    %40 = arith.mulf %31, %39 : vector<1x512xf32>
    %41 = arith.index_cast %c0_i32 : i32 to index
    %c0_10 = arith.constant 0 : index
    %42 = vector.load %arg4[%41, %c0_10] : memref<1x512xf32, #tpu.memory_space<vmem>>, vector<1x512xf32>
    tpu.vector_store %arg4[%41, %c0_10], %40 {strides = array<i32>} : memref<1x512xf32, #tpu.memory_space<vmem>>, vector<1x512xf32>,
    %c1_i32 = arith.constant 1 : i32
    return
  }
  func.func @transform_0(%arg0: i32) -> (i32, i32, i32) {
    %c0_i32 = arith.constant 0 : i32
    %c0_i32_0 = arith.constant 0 : i32
    %c0_i32_1 = arith.constant 0 : i32
    return %c0_i32, %arg0, %c0_i32_0 : i32, i32, i32
  }
  func.func @transform_1(%arg0: i32) -> (i32, i32) {
    %c0_i32 = arith.constant 0 : i32
    %c0_i32_0 = arith.constant 0 : i32
    %c0_i32_1 = arith.constant 0 : i32
    return %c0_i32, %c0_i32_0 : i32, i32
  }
  func.func @transform_2(%arg0: i32) -> i32 {
    %c0_i32 = arith.constant 0 : i32
    %c0_i32_0 = arith.constant 0 : i32
    return %c0_i32 : i32
  }
  func.func @transform_3(%arg0: i32) -> (i32, i32) {
    %c0_i32 = arith.constant 0 : i32
    %c0_i32_0 = arith.constant 0 : i32
    return %arg0, %c0_i32 : i32, i32
  }
}

</mosaic_0001>

<llo_original>
// kernel: tpu_custom_call.1
$region0: #{tpu_custom_call.1}
  #allocation0 [shape = 'u32[]', space=smem, size = 0x4, offset = 0x4, fixed_abs, tag = 'smem constant byte address 0x4 - core index']
  #allocation1 [shape = 'u32[144,128]{1,0:T(1,128)}', space=vmem, size = 0x12000, scoped, tag = 'internal scratch']
  #allocation2 [shape = 'f32[1]{0:T(128)S(6)}', space=smem, size = 0x200, scoped, tag = 'scoped memory for tpu_custom_call.1']
  %s0 = inlined_call_operand.hbm [shape: s32[4,1,512], index: 0, kind: input, shape index: {}]
  %s1 = inlined_call_operand.hbm [shape: f32[8,16], index: 1, kind: input, shape index: {}]
  %s2 = inlined_call_operand.<no memory space> [shape: f32[1], index: 2, kind: input, shape index: {}]
  %s3 = inlined_call_operand.hbm [shape: f32[1,512], index: 3, kind: output, shape index: {}]
  %s4 = sld [smem:[#allocation0]]
  $region30: #{tpu_custom_call.1} parent=0
    _
  %s6 = ssub.s32 1, %s4
  %s7 = scalar_select 0, %s6, %s4
  %8 = sst [smem:[#allocation2]] %s2
  $region1: #{tpu_custom_call.1} parent=0
    #allocation3 [shape = 'u8[8192]{0}', space=vmem, size = 0x2000, scoped, tag = 'input window, operand 0, single buffered']
    #allocation4 [shape = 's32[1]{0}', space=sflag, size = 0x4, scoped, tag = 'scoped memory for tpu_custom_call.1']
    #allocation5 [shape = 's32[1]{0}', space=sflag, size = 0x4, scoped, tag = 'scoped memory for tpu_custom_call.1']
    #allocation6 [shape = 'u8[4096]{0}', space=vmem, size = 0x1000, scoped, tag = 'input window, operand 1, single buffered']
    #allocation7 [shape = 's32[1]{0}', space=sflag, size = 0x4, scoped, tag = 'scoped memory for tpu_custom_call.1']
    #allocation8 [shape = 'u8[2048]{0}', space=vmem, size = 0x800, scoped, tag = 'output window, operand 0, single buffered']
    %9 = vsyncpa [#allocation4], 0
    %10 = vsyncpa [#allocation7], 0
    %11 = vsyncpa [#allocation5], 0
    // Predicated region
    $region2: #{tpu_custom_call.1} parent=1 // pred_check
      _
    $region3: #{tpu_custom_call.1} parent=1 // pred_check_branch
      %13 = sbr.rel (0) target = $region5
    $region4: #{tpu_custom_call.1} parent=1 // pred_region
      %s15 = ssub.s32 256, 256
      %16 = vsyncadd [#allocation4], %s15
      %s17 = sshll.u32 [#allocation3], 4
      %s18 = int_to_ptr.vmem [resolvable:$true] %s17
      %23 = dma.hbm_to_vmem [thread:$0]  %s0, 256, %s18, [#allocation4], 64, 64, 4
    $region5: #{tpu_custom_call.1} parent=1 // pred_fallthru
      _
    // Predicated region
    $region6: #{tpu_custom_call.1} parent=1 // pred_check
      _
    $region7: #{tpu_custom_call.1} parent=1 // pred_check_branch
      %25 = sbr.rel (0) target = $region9
    $region8: #{tpu_custom_call.1} parent=1 // pred_region
      %s27 = ssub.s32 128, 128
      %28 = vsyncadd [#allocation7], %s27
      %s30 = sshll.u32 [#allocation6], 4
      %s31 = int_to_ptr.vmem [resolvable:$true] %s30
      %33 = dma.hbm_to_vmem [thread:$0]  %s1, 128, %s31, [#allocation7]
    $region9: #{tpu_custom_call.1} parent=1 // pred_fallthru
      _
    // Predicated region
    $region10: #{tpu_custom_call.1} parent=1 // pred_check
      _
    $region11: #{tpu_custom_call.1} parent=1 // pred_check_branch
      %35 = sbr.rel (0) target = $region13
    $region12: #{tpu_custom_call.1} parent=1 // pred_region
      _
    $region13: #{tpu_custom_call.1} parent=1 // pred_fallthru
      _
    // Predicated region
    $region14: #{tpu_custom_call.1} parent=1 // pred_check
      _
    $region15: #{tpu_custom_call.1} parent=1 // pred_check_branch
      %37 = sbr.rel (0) target = $region17
    $region16: #{tpu_custom_call.1} parent=1 // pred_region
      %38 = dma.done [#allocation4], 256
    $region17: #{tpu_custom_call.1} parent=1 // pred_fallthru
      _
    // Predicated region
    $region18: #{tpu_custom_call.1} parent=1 // pred_check
      _
    $region19: #{tpu_custom_call.1} parent=1 // pred_check_branch
      %40 = sbr.rel (0) target = $region21
    $region20: #{tpu_custom_call.1} parent=1 // pred_region
      %41 = dma.done [#allocation7], 128
    $region21: #{tpu_custom_call.1} parent=1 // pred_fallthru
      _
    %s42 = sld [smem:[#allocation2]]
    %s43 = ssub.f32 0.0, %s42
    %v44 = vld [vmem:[#allocation6] sm:$0xff]
    %v45 = vlaneseq
    %v46 = vshrl.u32 %v45, 7
    %v47 = vadd.s32 %v46, 8
    %v48 = vld [vmem:[#allocation3] sm:$0xf]
    %s49 = scalar_lea.vmem [#allocation3], 4
    %v50 = vld [vmem:[%s49] sm:$0xf]
    %s51 = scalar_lea.vmem [#allocation3], 8
    %v52 = vld [vmem:[%s51] sm:$0xf]
    %s53 = scalar_lea.vmem [#allocation3], 12
    %v54 = vld [vmem:[%s53] sm:$0xf]
    %v55 = vlaneseq
    %v56 = vshrl.u32 %v55, 7
    %v57 = vsub.s32 0, %v56
    %v58 = vrot.slane %v54, %v57
    %v59 = vlaneseq
    %v60 = vshrl.u32 %v59, 7
    %v61 = vsub.s32 1, %v60
    %v62 = vrot.slane %v54, %v61
    %v63 = vlaneseq
    %v64 = vshrl.u32 %v63, 7
    %v65 = vsub.s32 2, %v64
    %v66 = vrot.slane %v54, %v65
    %v67 = vlaneseq
    %v68 = vshrl.u32 %v67, 7
    %v69 = vsub.s32 3, %v68
    %v70 = vrot.slane %v54, %v69
    %v75 = vlaneseq
    %v76 = vshrl.u32 %v75, 7
    %v77 = vsub.s32 0, %v76
    %v78 = vrot.slane %v48, %v77
    %v79 = vlaneseq
    %v80 = vshrl.u32 %v79, 7
    %v81 = vsub.s32 1, %v80
    %v82 = vrot.slane %v48, %v81
    %v83 = vlaneseq
    %v84 = vshrl.u32 %v83, 7
    %v85 = vsub.s32 2, %v84
    %v86 = vrot.slane %v48, %v85
    %v87 = vlaneseq
    %v88 = vshrl.u32 %v87, 7
    %v89 = vsub.s32 3, %v88
    %v90 = vrot.slane %v48, %v89
    %vm91 = vcmp.eq.s32.totalorder %v46, %v78
    %vm92 = vcmp.eq.s32.totalorder %v46, %v82
    %vm93 = vcmp.eq.s32.totalorder %v46, %v86
    %vm94 = vcmp.eq.s32.totalorder %v46, %v90
    %vm95 = vcmp.eq.s32.totalorder %v47, %v78
    %vm96 = vcmp.eq.s32.totalorder %v47, %v82
    %vm97 = vcmp.eq.s32.totalorder %v47, %v86
    %vm98 = vcmp.eq.s32.totalorder %v47, %v90
    %v99 = vsel %vm91, 1, 0
    %v100 = vsel %vm92, 1, 0
    %v101 = vsel %vm93, 1, 0
    %v102 = vsel %vm94, 1, 0
    %v103 = vsel %vm95, 1, 0
    %v104 = vsel %vm96, 1, 0
    %v105 = vsel %vm97, 1, 0
    %v106 = vsel %vm98, 1, 0
    %v107 = vcvt.s32.f32 %v99
    %v108 = vcvt.s32.f32 %v100
    %v109 = vcvt.s32.f32 %v101
    %v110 = vcvt.s32.f32 %v102
    %v111 = vcvt.s32.f32 %v103
    %v112 = vcvt.s32.f32 %v104
    %v113 = vcvt.s32.f32 %v105
    %v114 = vcvt.s32.f32 %v106
    %vm115 = vcmask 130048
    %v117 = vsel %vm115, %v44, 0
    %119 = vmatprep.subr.mxu0 %v108
    %120 = vmatpush1.msra.mxu0 %v107
    %121 = vmatprep.subr.mxu0 %v112
    %122 = vmatpush1.msra.mxu0 %v111
    %123 = vmatprep.subr.mxu0 0.0
    %124 = vmatpush1.msra.mxu0 0.0
    %125 = vmatprep.subr.mxu0 0.0
    %126 = vmatpush1.msra.mxu0 0.0
    %127 = vmatprep.subr.mxu0 0.0
    %128 = vmatpush1.msra.mxu0 0.0
    %129 = vmatprep.subr.mxu0 0.0
    %130 = vmatpush1.msra.mxu0 0.0
    %131 = vmatprep.subr.mxu0 0.0
    %132 = vmatpush1.msra.mxu0 0.0
    %133 = vmatprep.subr.mxu0 0.0
    %134 = vmatpush1.msra.mxu0 0.0
    %135 = vmatprep.subr.mxu0 0.0
    %136 = vmatpush1.msra.mxu0 0.0
    %137 = vmatprep.subr.mxu0 0.0
    %138 = vmatpush1.msra.mxu0 0.0
    %139 = vmatprep.subr.mxu0 0.0
    %140 = vmatpush1.msra.mxu0 0.0
    %141 = vmatprep.subr.mxu0 0.0
    %142 = vmatpush1.msra.mxu0 0.0
    %143 = vmatprep.subr.mxu0 0.0
    %144 = vmatpush1.msra.mxu0 0.0
    %145 = vmatprep.subr.mxu0 0.0
    %146 = vmatpush1.msra.mxu0 0.0
    %147 = vmatprep.subr.mxu0 0.0
    %148 = vmatpush1.msra.mxu0 0.0
    %149 = vmatprep.subr.mxu0 0.0
    %150 = vmatpush1.msra.mxu0 0.0
    %151 = vmatprep.subr.mxu0 0.0
    %152 = vmatpush1.msra.mxu0 0.0
    %153 = vmatprep.subr.mxu0 0.0
    %154 = vmatpush1.msra.mxu0 0.0
    %155 = vmatprep.subr.mxu0 0.0
    %156 = vmatpush1.msra.mxu0 0.0
    %157 = vmatprep.subr.mxu0 0.0
    %158 = vmatpush1.msra.mxu0 0.0
    %159 = vmatprep.subr.mxu0 0.0
    %160 = vmatpush1.msra.mxu0 0.0
    %161 = vmatprep.subr.mxu0 0.0
    %162 = vmatpush1.msra.mxu0 0.0
    %163 = vmatprep.subr.mxu0 0.0
    %164 = vmatpush1.msra.mxu0 0.0
    %165 = vmatprep.subr.mxu0 0.0
    %166 = vmatpush1.msra.mxu0 0.0
    %167 = vmatprep.subr.mxu0 0.0
    %168 = vmatpush1.msra.mxu0 0.0
    %169 = vmatprep.subr.mxu0 0.0
    %170 = vmatpush1.msra.mxu0 0.0
    %171 = vmatprep.subr.mxu0 0.0
    %172 = vmatpush1.msra.mxu0 0.0
    %173 = vmatprep.subr.mxu0 0.0
    %174 = vmatpush1.msra.mxu0 0.0
    %175 = vmatprep.subr.mxu0 0.0
    %176 = vmatpush1.msra.mxu0 0.0
    %177 = vmatprep.subr.mxu0 0.0
    %178 = vmatpush1.msra.mxu0 0.0
    %179 = vmatprep.subr.mxu0 0.0
    %180 = vmatpush1.msra.mxu0 0.0
    %181 = vmatprep.subr.mxu0 0.0
    %182 = vmatpush1.msra.mxu0 0.0
    %183 = vmatprep.mubr.f32.mxu0 0.0
    %184 = vmatmul.mubr.f32.gmra.mrb[0].mxu0 %v117
    %v185 = vpop.f32.mrb[0].mxu0
    %v186 = vadd.f32 0.0, %v185
    %v187 = vpop.f32.mrb[0].mxu0
    %v188 = vadd.f32 0.0, %v187
    %189 = vdwg.mxu0
    %190 = vmatprep.subr.mxu0 %v110
    %191 = vmatpush1.msra.mxu0 %v109
    %192 = vmatprep.subr.mxu0 %v114
    %193 = vmatpush1.msra.mxu0 %v113
    %194 = vmatprep.subr.mxu0 0.0
    %195 = vmatpush1.msra.mxu0 0.0
    %196 = vmatprep.subr.mxu0 0.0
    %197 = vmatpush1.msra.mxu0 0.0
    %198 = vmatprep.subr.mxu0 0.0
    %199 = vmatpush1.msra.mxu0 0.0
    %200 = vmatprep.subr.mxu0 0.0
    %201 = vmatpush1.msra.mxu0 0.0
    %202 = vmatprep.subr.mxu0 0.0
    %203 = vmatpush1.msra.mxu0 0.0
    %204 = vmatprep.subr.mxu0 0.0
    %205 = vmatpush1.msra.mxu0 0.0
    %206 = vmatprep.subr.mxu0 0.0
    %207 = vmatpush1.msra.mxu0 0.0
    %208 = vmatprep.subr.mxu0 0.0
    %209 = vmatpush1.msra.mxu0 0.0
    %210 = vmatprep.subr.mxu0 0.0
    %211 = vmatpush1.msra.mxu0 0.0
    %212 = vmatprep.subr.mxu0 0.0
    %213 = vmatpush1.msra.mxu0 0.0
    %214 = vmatprep.subr.mxu0 0.0
    %215 = vmatpush1.msra.mxu0 0.0
    %216 = vmatprep.subr.mxu0 0.0
    %217 = vmatpush1.msra.mxu0 0.0
    %218 = vmatprep.subr.mxu0 0.0
    %219 = vmatpush1.msra.mxu0 0.0
    %220 = vmatprep.subr.mxu0 0.0
    %221 = vmatpush1.msra.mxu0 0.0
    %222 = vmatprep.subr.mxu0 0.0
    %223 = vmatpush1.msra.mxu0 0.0
    %224 = vmatprep.subr.mxu0 0.0
    %225 = vmatpush1.msra.mxu0 0.0
    %226 = vmatprep.subr.mxu0 0.0
    %227 = vmatpush1.msra.mxu0 0.0
    %228 = vmatprep.subr.mxu0 0.0
    %229 = vmatpush1.msra.mxu0 0.0
    %230 = vmatprep.subr.mxu0 0.0
    %231 = vmatpush1.msra.mxu0 0.0
    %232 = vmatprep.subr.mxu0 0.0
    %233 = vmatpush1.msra.mxu0 0.0
    %234 = vmatprep.subr.mxu0 0.0
    %235 = vmatpush1.msra.mxu0 0.0
    %236 = vmatprep.subr.mxu0 0.0
    %237 = vmatpush1.msra.mxu0 0.0
    %238 = vmatprep.subr.mxu0 0.0
    %239 = vmatpush1.msra.mxu0 0.0
    %240 = vmatprep.subr.mxu0 0.0
    %241 = vmatpush1.msra.mxu0 0.0
    %242 = vmatprep.subr.mxu0 0.0
    %243 = vmatpush1.msra.mxu0 0.0
    %244 = vmatprep.subr.mxu0 0.0
    %245 = vmatpush1.msra.mxu0 0.0
    %246 = vmatprep.subr.mxu0 0.0
    %247 = vmatpush1.msra.mxu0 0.0
    %248 = vmatprep.subr.mxu0 0.0
    %249 = vmatpush1.msra.mxu0 0.0
    %250 = vmatprep.subr.mxu0 0.0
    %251 = vmatpush1.msra.mxu0 0.0
    %252 = vmatprep.subr.mxu0 0.0
    %253 = vmatpush1.msra.mxu0 0.0
    %254 = vmatprep.mubr.f32.mxu0 0.0
    %255 = vmatmul.mubr.f32.gmra.mrb[0].mxu0 %v117
    %v256 = vpop.f32.mrb[0].mxu0
    %v257 = vadd.f32 0.0, %v256
    %v258 = vpop.f32.mrb[0].mxu0
    %v259 = vadd.f32 0.0, %v258
    %260 = vdwg.mxu0
    %v261 = vlaneseq
    %v262 = vshrl.u32 %v261, 7
    %v263 = vsub.s32 0, %v262
    %v264 = vrot.slane %v50, %v263
    %v265 = vlaneseq
    %v266 = vshrl.u32 %v265, 7
    %v267 = vsub.s32 1, %v266
    %v268 = vrot.slane %v50, %v267
    %v269 = vlaneseq
    %v270 = vshrl.u32 %v269, 7
    %v271 = vsub.s32 2, %v270
    %v272 = vrot.slane %v50, %v271
    %v273 = vlaneseq
    %v274 = vshrl.u32 %v273, 7
    %v275 = vsub.s32 3, %v274
    %v276 = vrot.slane %v50, %v275
    %vm277 = vcmp.eq.s32.totalorder %v46, %v264
    %vm278 = vcmp.eq.s32.totalorder %v46, %v268
    %vm279 = vcmp.eq.s32.totalorder %v46, %v272
    %vm280 = vcmp.eq.s32.totalorder %v46, %v276
    %v281 = vlaneseq
    %v282 = vshrl.u32 %v281, 7
    %v283 = vsub.s32 0, %v282
    %v284 = vrot.slane %v52, %v283
    %v285 = vlaneseq
    %v286 = vshrl.u32 %v285, 7
    %v287 = vsub.s32 1, %v286
    %v288 = vrot.slane %v52, %v287
    %v289 = vlaneseq
    %v290 = vshrl.u32 %v289, 7
    %v291 = vsub.s32 2, %v290
    %v292 = vrot.slane %v52, %v291
    %v293 = vlaneseq
    %v294 = vshrl.u32 %v293, 7
    %v295 = vsub.s32 3, %v294
    %v296 = vrot.slane %v52, %v295
    %vm297 = vcmp.eq.s32.totalorder %v46, %v284
    %vm298 = vcmp.eq.s32.totalorder %v46, %v288
    %vm299 = vcmp.eq.s32.totalorder %v46, %v292
    %vm300 = vcmp.eq.s32.totalorder %v46, %v296
    %vm301 = vmand %vm277, %vm297
    %vm302 = vmand %vm278, %vm298
    %vm303 = vmand %vm279, %vm299
    %vm304 = vmand %vm280, %vm300
    %v305 = vsel %vm301, %v186, 0.0
    %v306 = vsel %vm302, %v188, 0.0
    %v307 = vsel %vm303, %v257, 0.0
    %v308 = vsel %vm304, %v259, 0.0
    %v309 = vrot.slane %v305, 4
    %v310 = vadd.f32 %v305, %v309
    %v311 = vrot.slane %v310, 2
    %v312 = vadd.f32 %v310, %v311
    %v313 = vrot.slane %v312, 1
    %v314 = vadd.f32 %v312, %v313
    %v315 = vrot.slane %v306, 4
    %v316 = vadd.f32 %v306, %v315
    %v317 = vrot.slane %v316, 2
    %v318 = vadd.f32 %v316, %v317
    %v319 = vrot.slane %v318, 1
    %v320 = vadd.f32 %v318, %v319
    %v321 = vrot.slane %v307, 4
    %v322 = vadd.f32 %v307, %v321
    %v323 = vrot.slane %v322, 2
    %v324 = vadd.f32 %v322, %v323
    %v325 = vrot.slane %v324, 1
    %v326 = vadd.f32 %v324, %v325
    %v327 = vrot.slane %v308, 4
    %v328 = vadd.f32 %v308, %v327
    %v329 = vrot.slane %v328, 2
    %v330 = vadd.f32 %v328, %v329
    %v331 = vrot.slane %v330, 1
    %v332 = vadd.f32 %v330, %v331
    %v333 = vcvt.s32.f32 %v48
    %v335 = vlaneseq
    %v336 = vshrl.u32 %v335, 7
    %v337 = vsub.s32 0, %v336
    %v338 = vrot.slane %v333, %v337
    %v339 = vlaneseq
    %v340 = vshrl.u32 %v339, 7
    %v341 = vsub.s32 1, %v340
    %v342 = vrot.slane %v333, %v341
    %v343 = vlaneseq
    %v344 = vshrl.u32 %v343, 7
    %v345 = vsub.s32 2, %v344
    %v346 = vrot.slane %v333, %v345
    %v347 = vlaneseq
    %v348 = vshrl.u32 %v347, 7
    %v349 = vsub.s32 3, %v348
    %v350 = vrot.slane %v333, %v349
    %v355 = vsub.f32 %v58, %v338
    %v356 = vsub.f32 %v62, %v342
    %v357 = vsub.f32 %v66, %v346
    %v358 = vsub.f32 %v70, %v350
    %v359 = vand.u32 2147483647, %v355
    %v360 = vand.u32 2147483647, %v356
    %v361 = vand.u32 2147483647, %v357
    %v362 = vand.u32 2147483647, %v358
    %v363 = vstv %s43
    %v364 = vmul.f32 %v363, %v359
    %v365 = vmul.f32 %v363, %v360
    %v366 = vmul.f32 %v363, %v361
    %v367 = vmul.f32 %v363, %v362
    %v368 = vmul.f32 %v364, 1.442695
    %v369 = vpow.pop %v368
    %v370 = vmul.f32 %v365, 1.442695
    %v371 = vpow.pop %v370
    %v372 = vmul.f32 %v366, 1.442695
    %v373 = vpow.pop %v372
    %v374 = vmul.f32 %v367, 1.442695
    %v375 = vpow.pop %v374
    %v376 = vstv %s42
    %v377 = vmul.f32 %v376, %v369
    %v378 = vmul.f32 %v376, %v371
    %v379 = vmul.f32 %v376, %v373
    %v380 = vmul.f32 %v376, %v375
    %v381 = vmul.f32 %v314, %v377
    %v382 = vmul.f32 %v320, %v378
    %v383 = vmul.f32 %v326, %v379
    %v384 = vmul.f32 %v332, %v380
    %v389 = vcombine.low %v381, %v382
    %v390 = vcombine.low %v383, %v384
    %v392 = vunpack.c.l.s4 1966171168
    %v393 = vunpack.c.0.s8 %v392
    %v394 = vlaneseq
    %v395 = vshrl.u32 %v394, 7
    %v396 = vsub.s32 %v393, %v395
    %v397 = vrot.slane %v389, %v396
    %v399 = vunpack.c.l.s4 1966171168
    %v400 = vunpack.c.0.s8 %v399
    %v401 = vlaneseq
    %v402 = vshrl.u32 %v401, 7
    %v403 = vsub.s32 %v400, %v402
    %v404 = vrot.slane %v390, %v403
    %v405 = vcombine.low %v397, %v404
    %v407 = vunpack.c.l.s4 1966171168
    %v408 = vunpack.c.0.s8 %v407
    %v409 = vlaneseq
    %v410 = vshrl.u32 %v409, 7
    %v411 = vsub.s32 %v408, %v410
    %v412 = vrot.slane %v405, %v411
    %v414 = vlaneseq
    %vm415 = vcmp.ge.s32.totalorder %v414, 0
    %vm416 = vcmp.lt.s32.totalorder %v414, 512
    %vm417 = vmand %vm415, %vm416
    %418 = vst.msk [vmem:[#allocation8] sm:$0xf] %vm417, %v412
    // Predicated region
    $region22: #{tpu_custom_call.1} parent=1 // pred_check
      _
    $region23: #{tpu_custom_call.1} parent=1 // pred_check_branch
      %420 = sbr.rel (0) target = $region25
    $region24: #{tpu_custom_call.1} parent=1 // pred_region
      %s422 = ssub.s32 64, 64
      %423 = vsyncadd [#allocation5], %s422
      %s425 = sshll.u32 [#allocation8], 4
      %s426 = int_to_ptr.vmem [resolvable:$true] %s425
      %428 = dma.vmem_to_hbm [thread:$0]  %s426, 64, %s3, [#allocation5]
    $region25: #{tpu_custom_call.1} parent=1 // pred_fallthru
      _
    // Predicated region
    $region26: #{tpu_custom_call.1} parent=1 // pred_check
      _
    $region27: #{tpu_custom_call.1} parent=1 // pred_check_branch
      %430 = sbr.rel (0) target = $region29
    $region28: #{tpu_custom_call.1} parent=1 // pred_region
      %431 = dma.done [#allocation5], 64
    $region29: #{tpu_custom_call.1} parent=1 // pred_fallthru
      _
    %432 = vsyncpa [#allocation4], 1
    %433 = vsyncpa [#allocation7], 1
    %434 = vsyncpa [#allocation5], 1

</llo_original>
